<compile_context>
chip_gen: v7x
topology: tpu7x:2x2x1
jax: 0.10.0
libtpu: 0.0.40
codegen_flags: <defaults>
</compile_context>

<pallas_src>
import functools

import jax
import jax.numpy as jnp
from jax.experimental import pallas as pl
from jax.experimental.pallas import tpu as pltpu


def _round_up(a: int, m: int) -> int:
    return (a + m - 1) // m * m


def _cdiv(a: int, b: int) -> int:
    return (a + b - 1) // b


def _pick_tc(in_channels: int) -> int:
    # Full-dim block is always legal; use it when C is small or not 128-aligned
    # (avoids padding C on the host side).
    if in_channels % 128 != 0 or in_channels <= 128:
        return in_channels
    # C is a 128-multiple and >= 256: prefer >= 2 lane-dense tiles so the
    # "parallel" grid axis is non-degenerate (keeps both v7x TensorCores busy),
    # capped at 512 to bound the resident (num_graphs, tc) accumulator.
    for tc in (512, 384, 256, 128):
        if tc < in_channels and in_channels % tc == 0:
            return tc
    return in_channels


def _choose_tiles(n_nodes: int, in_channels: int, num_graphs: int, itemsize: int):
    """Pick (tn, tc) and a VMEM limit from an explicit per-core budget."""
    tc = _pick_tc(in_channels)
    budget = 40 * 1024 * 1024           # safe on v7x (64 MiB physical) and below
    b_pad = _round_up(max(num_graphs, 1), 8)

    # Very large num_graphs: shrink tc (stays a 128-multiple dividing C) so the
    # resident accumulator + output block stay within budget.
    while tc % 256 == 0 and b_pad * tc * (4 + 2 * itemsize) > budget // 2:
        tc //= 2
    # TODO(synk): for num_graphs so large that even tc=128 blows the budget,
    # add a graph-axis grid dimension (tile the (num_graphs, tc) accumulator).

    fixed = b_pad * tc * 4                     # f32 sums scratch
    fixed += b_pad * 128 * 4                   # counts scratch (lane-padded)
    fixed += 2 * b_pad * tc * itemsize         # double-buffered output block

    # Node tile: as large as the budget allows (amortizes per-step overhead,
    # key on v7x's 3.2 TB/s HBM); kept a multiple of 128.
    tn = 2048
    while tn > 128 and fixed + 2 * tn * (tc * itemsize + 4) > budget:
        tn //= 2
    tn = min(tn, _round_up(n_nodes, 128))

    vmem_need = fixed + 2 * tn * (tc * itemsize + 4)
    vmem_limit = int(min(64 * 1024 * 1024, max(32 * 1024 * 1024, vmem_need * 3 // 2)))
    return tn, tc, vmem_limit


def _make_mean_pool_kernel(n_nodes: int, tn: int):
    ragged = (n_nodes % tn) != 0

    def kernel(batch_ref, x_ref, o_ref, sums_ref, counts_ref):
        # batch_ref: (1, tn) int32   x_ref: (tn, tc)   o_ref: (B, tc)
        # sums_ref:  (B, tc) f32     counts_ref: (B, 1) f32
        k = pl.program_id(1)

        @pl.when(k == 0)
        def _init():
            sums_ref[...] = jnp.zeros_like(sums_ref)
            counts_ref[...] = jnp.zeros_like(counts_ref)

        x_tile = x_ref[...]                      # (tn, tc), native dtype
        batch_tile = batch_ref[...]              # (1, tn) int32
        num_graphs = sums_ref.shape[0]

        if ragged:
            # x is NOT host-padded: the last N tile extends past n_nodes and
            # the OOB rows of the VMEM buffer are stale garbage (maybe NaN/Inf).
            # Zero them explicitly (n_nodes is a trace-time constant; this
            # `where` rides in otherwise-free VPU slots under the DMA).
            node_ids = k * tn + jax.lax.broadcasted_iota(jnp.int32, x_tile.shape, 0)
            x_tile = jnp.where(node_ids < n_nodes, x_tile, 0)

        # Per-tile one-hot: one_hot[g, n] = 1 iff node n of this tile is in
        # graph g.  Padded / out-of-range batch ids never match -> dropped.
        seg_ids = jax.lax.broadcasted_iota(jnp.int32, (num_graphs, tn), 0)
        one_hot_f32 = (seg_ids == batch_tile).astype(jnp.float32)

        # Per-graph node counts for this tile (f32: exact up to 2^24 nodes/graph).
        counts_ref[...] += jnp.sum(one_hot_f32, axis=1, keepdims=True)

        # Segment-sum on the MXU, f32 accumulation; x fed in its native dtype.
        # TODO(synk): on v5e with f32 x and num_graphs >~ 100, feed bf16 LHS/RHS
        # to the MXU (one-hot is exact in bf16) to avoid the compute-bound cliff.
        sums_ref[...] += jnp.dot(one_hot_f32.astype(x_tile.dtype), x_tile,
                                 preferred_element_type=jnp.float32)

        @pl.when(k == pl.num_programs(1) - 1)
        def _finalize():
            safe = jnp.maximum(counts_ref[...], 1.0)   # empty graph -> mean 0
            inv = pl.reciprocal(safe, approx=True)     # EUP slot
            inv = inv * (2.0 - safe * inv)             # Newton step -> ~f32 exact
            o_ref[...] = (sums_ref[...] * inv).astype(o_ref.dtype)

    return kernel


@functools.partial(jax.jit, static_argnames=("num_graphs",))
def mean_read_out(x: jax.Array, batch: jax.Array, num_graphs: int) -> jax.Array:
    """Pallas implementation of MeanReadOut.forward(x, batch)."""
    n_nodes, in_channels = x.shape
    itemsize = jnp.dtype(x.dtype).itemsize
    tn, tc, vmem_limit = _choose_tiles(n_nodes, in_channels, num_graphs, itemsize)

    n_tiles = _cdiv(n_nodes, tn)
    n_pad = n_tiles * tn
    c_tiles = in_channels // tc   # tc == in_channels or tc | in_channels

    # Only `batch` is padded (cheap, 4 B/node), with an out-of-range id so
    # padded nodes never match any graph.  x is streamed un-padded.
    batch_2d = jnp.pad(batch.astype(jnp.int32), (0, n_pad - n_nodes),
                       constant_values=num_graphs).reshape(1, n_pad)

    kernel = _make_mean_pool_kernel(n_nodes, tn)

    out = pl.pallas_call(
        kernel,
        out_shape=jax.ShapeDtypeStruct((num_graphs, in_channels), x.dtype),
        grid_spec=pltpu.PrefetchScalarGridSpec(
            num_scalar_prefetch=0,
            grid=(c_tiles, n_tiles),          # (parallel C, reduction N last)
            in_specs=[
                pl.BlockSpec((1, tn), lambda j, k: (0, k)),    # batch row tile
                # If profiling on v5e shows exposed DMA gaps, add
                # pipeline_mode=pl.Buffered(3) here (VMEM is plentiful there).
                pl.BlockSpec((tn, tc), lambda j, k: (k, j)),   # x tile (no pad)
            ],
            out_specs=pl.BlockSpec((num_graphs, tc), lambda j, k: (0, j)),
            scratch_shapes=[
                pltpu.VMEM((num_graphs, tc), jnp.float32),     # running sums
                pltpu.VMEM((num_graphs, 1), jnp.float32),      # running counts
            ],
        ),
        compiler_params=pltpu.CompilerParams(
            dimension_semantics=("parallel", "arbitrary"),
            vmem_limit_bytes=vmem_limit,
        ),
    )(batch_2d, x)
    return out


def _reference(x, batch, num_graphs):
    sums = jax.ops.segment_sum(x.astype(jnp.float32), batch, num_segments=num_graphs)
    cnt = jax.ops.segment_sum(jnp.ones((x.shape[0],), jnp.float32), batch,
                              num_segments=num_graphs)
    return (sums / jnp.maximum(cnt, 1.0)[:, None]).astype(x.dtype)


if __name__ == "__main__":
    key = jax.random.PRNGKey(0)

    # Small case from the module spec: 8 nodes, 32 channels, 2 graphs.
    kx, kb = jax.random.split(key)
    x = jax.random.normal(kx, (8, 32), dtype=jnp.float32)
    batch = jnp.array([0, 0, 0, 0, 0, 1, 1, 1], dtype=jnp.int32)
    out = jax.block_until_ready(mean_read_out(x, batch, 2))
    ref = _reference(x, batch, 2)
    assert out.shape == (2, 32)
    assert jnp.allclose(out, ref, atol=1e-5, rtol=1e-5)

    # Multi-tile case: 2 N tiles (ragged last one, un-padded x) and 2 C tiles.
    k1, k2 = jax.random.split(kb)
    n2, c2, b2 = 3000, 256, 5
    x2 = jax.random.normal(k1, (n2, c2), dtype=jnp.float32)
    batch2 = jnp.sort(jax.random.randint(k2, (n2,), 0, b2)).astype(jnp.int32)
    out2 = jax.block_until_ready(mean_read_out(x2, batch2, b2))
    ref2 = _reference(x2, batch2, b2)
    assert out2.shape == (b2, c2)
    assert jnp.allclose(out2, ref2, atol=1e-5, rtol=1e-5)

    # Non-128 channel count (full-dim C block, no host-side pad of x).
    k3, k4 = jax.random.split(k1)
    x3 = jax.random.normal(k3, (600, 200), dtype=jnp.float32)
    batch3 = jnp.sort(jax.random.randint(k4, (600,), 0, 3)).astype(jnp.int32)
    out3 = jax.block_until_ready(mean_read_out(x3, batch3, 3))
    ref3 = _reference(x3, batch3, 3)
    assert out3.shape == (3, 200)
    assert jnp.allclose(out3, ref3, atol=1e-5, rtol=1e-5)

    print("KERNEL_OK")
</pallas_src>

<mosaic_0001>
module attributes {stable_mosaic.version = 11 : i64} {
  func.func @kernel(%arg0: i32, %arg1: i32, %arg2: memref<1x128xi32, #tpu.memory_space<vmem>>, %arg3: memref<128x32xf32, #tpu.memory_space<vmem>>, %arg4: memref<2x32xf32, #tpu.memory_space<vmem>>, %arg5: memref<2x32xf32, #tpu.memory_space<vmem>>, %arg6: memref<2x1xf32, #tpu.memory_space<vmem>>) attributes {dimension_semantics = [#tpu.dimension_semantics<parallel>, #tpu.dimension_semantics<arbitrary>], iteration_bounds = array<i64: 1, 1>, scalar_prefetch = 0 : i64, scratch_operands = 2 : i64, tpu.core_type = #tpu.core_type<tc>, window_params = [{transform_indices = @transform_0, window_bounds = array<i64: 1, 128>}, {transform_indices = @transform_1, window_bounds = array<i64: 128, 32>}, {transform_indices = @transform_2, window_bounds = array<i64: 2, 32>}]} {
    %c0_i32 = arith.constant 0 : i32
    %0 = arith.cmpi eq, %arg1, %c0_i32 : i32
    %1 = arith.extui %0 : i1 to i32
    %c0_i32_0 = arith.constant 0 : i32
    %2 = arith.cmpi ne, %1, %c0_i32_0 : i32
    scf.if %2 {
      %cst_16 = arith.constant 0.000000e+00 : f32
      %31 = vector.broadcast %cst_16 : f32 to vector<2x32xf32>
      %c0_17 = arith.constant 0 : index
      %c0_18 = arith.constant 0 : index
      %32 = vector.load %arg5[%c0_17, %c0_18] : memref<2x32xf32, #tpu.memory_space<vmem>>, vector<2x32xf32>
      tpu.vector_store %arg5[%c0_17, %c0_18], %31 {strides = array<i32>} : memref<2x32xf32, #tpu.memory_space<vmem>>, vector<2x32xf32>,
      %cst_19 = arith.constant 0.000000e+00 : f32
      %33 = vector.broadcast %cst_19 : f32 to vector<2x1xf32>
      %c0_20 = arith.constant 0 : index
      %c0_21 = arith.constant 0 : index
      %34 = vector.load %arg6[%c0_20, %c0_21] : memref<2x1xf32, #tpu.memory_space<vmem>>, vector<2x1xf32>
      tpu.vector_store %arg6[%c0_20, %c0_21], %33 {strides = array<i32>} : memref<2x1xf32, #tpu.memory_space<vmem>>, vector<2x1xf32>,
    } else {
    }
    %c0 = arith.constant 0 : index
    %c0_1 = arith.constant 0 : index
    %3 = vector.load %arg3[%c0, %c0_1] : memref<128x32xf32, #tpu.memory_space<vmem>>, vector<128x32xf32>
    %c0_2 = arith.constant 0 : index
    %c0_3 = arith.constant 0 : index
    %4 = vector.load %arg2[%c0_2, %c0_3] : memref<1x128xi32, #tpu.memory_space<vmem>>, vector<1x128xi32>
    %c128_i32 = arith.constant 128 : i32
    %5 = arith.muli %arg1, %c128_i32 : i32
    %6 = tpu.iota {dimensions = array<i32: 0>} : vector<128x32xi32>
    %7 = vector.broadcast %5 : i32 to vector<128x32xi32>
    %8 = arith.addi %7, %6 : vector<128x32xi32>
    %c8_i32 = arith.constant 8 : i32
    %9 = vector.broadcast %c8_i32 : i32 to vector<128x32xi32>
    %10 = arith.cmpi slt, %8, %9 : vector<128x32xi32>
    %c0_i32_4 = arith.constant 0 : i32
    %11 = arith.sitofp %c0_i32_4 : i32 to f32
    %12 = vector.broadcast %11 : f32 to vector<128x32xf32>
    %13 = arith.select %10, %3, %12 : vector<128x32xi1>, vector<128x32xf32>
    %14 = tpu.iota {dimensions = array<i32: 0>} : vector<2x128xi32>
    %15 = vector.broadcast %4 : vector<1x128xi32> to vector<2x128xi32>
    %16 = arith.cmpi eq, %14, %15 : vector<2x128xi32>
    %17 = arith.extui %16 : vector<2x128xi1> to vector<2x128xi32>
    %18 = arith.sitofp %17 : vector<2x128xi32> to vector<2x128xf32>
    %c0_5 = arith.constant 0 : index
    %c0_6 = arith.constant 0 : index
    %19 = vector.load %arg6[%c0_5, %c0_6] : memref<2x1xf32, #tpu.memory_space<vmem>>, vector<2x1xf32>
    %cst = arith.constant dense<0.000000e+00> : vector<2xf32>
    %20 = vector.multi_reduction <add>, %18, %cst [1] : vector<2x128xf32> to vector<2xf32>
    %21 = vector.shape_cast %20 : vector<2xf32> to vector<2x1xf32>
    %22 = arith.addf %19, %21 : vector<2x1xf32>
    %c0_7 = arith.constant 0 : index
    %c0_8 = arith.constant 0 : index
    %23 = vector.load %arg6[%c0_7, %c0_8] : memref<2x1xf32, #tpu.memory_space<vmem>>, vector<2x1xf32>
    tpu.vector_store %arg6[%c0_7, %c0_8], %22 {strides = array<i32>} : memref<2x1xf32, #tpu.memory_space<vmem>>, vector<2x1xf32>,
    %c0_9 = arith.constant 0 : index
    %c0_10 = arith.constant 0 : index
    %24 = vector.load %arg5[%c0_9, %c0_10] : memref<2x32xf32, #tpu.memory_space<vmem>>, vector<2x32xf32>
    %cst_11 = arith.constant dense<0.000000e+00> : vector<2x32xf32>
    %25 = tpu.matmul %18, %13, %cst_11 {dimension_numbers = #tpu.dot_dimension_numbers<[1], [0], [0], [1], [0, 0, 1, 1], [], []>} : vector<2x128xf32>, vector<128x32xf32>, vector<2x32xf32> -> vector<2x32xf32>
    %26 = arith.addf %24, %25 : vector<2x32xf32>
    %c0_12 = arith.constant 0 : index
    %c0_13 = arith.constant 0 : index
    %27 = vector.load %arg5[%c0_12, %c0_13] : memref<2x32xf32, #tpu.memory_space<vmem>>, vector<2x32xf32>
    tpu.vector_store %arg5[%c0_12, %c0_13], %26 {strides = array<i32>} : memref<2x32xf32, #tpu.memory_space<vmem>>, vector<2x32xf32>,
    %c0_i32_14 = arith.constant 0 : i32
    %28 = arith.cmpi eq, %arg1, %c0_i32_14 : i32
    %29 = arith.extui %28 : i1 to i32
    %c0_i32_15 = arith.constant 0 : i32
    %30 = arith.cmpi ne, %29, %c0_i32_15 : i32
    scf.if %30 {
      %c0_16 = arith.constant 0 : index
      %c0_17 = arith.constant 0 : index
      %31 = vector.load %arg6[%c0_16, %c0_17] : memref<2x1xf32, #tpu.memory_space<vmem>>, vector<2x1xf32>
      %cst_18 = arith.constant 1.000000e+00 : f32
      %32 = vector.broadcast %cst_18 : f32 to vector<2x1xf32>
      %33 = arith.maximumf %31, %32 : vector<2x1xf32>
      %34 = tpu.reciprocal %33 {approx = true} : vector<2x1xf32> -> vector<2x1xf32>
      %35 = arith.mulf %33, %34 : vector<2x1xf32>
      %cst_19 = arith.constant 2.000000e+00 : f32
      %36 = vector.broadcast %cst_19 : f32 to vector<2x1xf32>
      %37 = arith.subf %36, %35 : vector<2x1xf32>
      %38 = arith.mulf %34, %37 : vector<2x1xf32>
      %c0_20 = arith.constant 0 : index
      %c0_21 = arith.constant 0 : index
      %39 = vector.load %arg5[%c0_20, %c0_21] : memref<2x32xf32, #tpu.memory_space<vmem>>, vector<2x32xf32>
      %40 = vector.broadcast %38 : vector<2x1xf32> to vector<2x32xf32>
      %41 = arith.mulf %39, %40 : vector<2x32xf32>
      %c0_22 = arith.constant 0 : index
      %c0_23 = arith.constant 0 : index
      %42 = vector.load %arg4[%c0_22, %c0_23] : memref<2x32xf32, #tpu.memory_space<vmem>>, vector<2x32xf32>
      tpu.vector_store %arg4[%c0_22, %c0_23], %41 {strides = array<i32>} : memref<2x32xf32, #tpu.memory_space<vmem>>, vector<2x32xf32>,
    } else {
    }
    return
  }
  func.func @transform_0(%arg0: i32, %arg1: i32) -> (i32, i32) {
    %c0_i32 = arith.constant 0 : i32
    %c0_i32_0 = arith.constant 0 : i32
    return %c0_i32, %arg1 : i32, i32
  }
  func.func @transform_1(%arg0: i32, %arg1: i32) -> (i32, i32) {
    %c0_i32 = arith.constant 0 : i32
    return %arg1, %arg0 : i32, i32
  }
  func.func @transform_2(%arg0: i32, %arg1: i32) -> (i32, i32) {
    %c0_i32 = arith.constant 0 : i32
    %c0_i32_0 = arith.constant 0 : i32
    return %c0_i32, %arg0 : i32, i32
  }
}

</mosaic_0001>

<llo_original>
// kernel: mean_read_out.1
$region0: #{mean_read_out.1}
  #allocation0 [shape = 'u32[]', space=smem, size = 0x4, offset = 0x4, fixed_abs, tag = 'smem constant byte address 0x4 - core index']
  #allocation1 [shape = 'u32[144,128]{1,0:T(1,128)}', space=vmem, size = 0x12000, scoped, tag = 'internal scratch']
  #allocation2 [shape = 'f32[2,32]{1,0:T(2,128)}', space=vmem, size = 0x400, scoped, tag = 'scratch operand']
  #allocation3 [shape = 'f32[2,1]{1,0:T(2,128)}', space=vmem, size = 0x400, scoped, tag = 'scratch operand']
  %s0 = inlined_call_operand.vmem [shape: s32[1,128], index: 0, kind: input, shape index: {}]
  %s1 = inlined_call_operand.hbm [shape: f32[8,32], index: 1, kind: input, shape index: {}]
  %s2 = inlined_call_operand.hbm [shape: f32[2,32], index: 2, kind: output, shape index: {}]
  %s3 = sld [smem:[#allocation0]]
  $region30: #{mean_read_out.1} parent=0
    _
  %s5 = ssub.s32 1, %s3
  %s6 = scalar_select 0, %s5, %s3
  $region1: #{mean_read_out.1} parent=0
    #allocation4 [shape = 'u8[65536]{0}', space=vmem, size = 0x10000, scoped, tag = 'input window, operand 1, single buffered']
    #allocation5 [shape = 's32[1]{0}', space=sflag, size = 0x4, scoped, tag = 'scoped memory for mean_read_out.1']
    #allocation6 [shape = 's32[1]{0}', space=sflag, size = 0x4, scoped, tag = 'scoped memory for mean_read_out.1']
    #allocation7 [shape = 'u8[1024]{0}', space=vmem, size = 0x400, scoped, tag = 'output window, operand 0, single buffered']
    %7 = vsyncpa [#allocation5], 0
    %8 = vsyncpa [#allocation6], 0
    // Predicated region
    $region2: #{mean_read_out.1} parent=1 // pred_check
      _
    $region3: #{mean_read_out.1} parent=1 // pred_check_branch
      %10 = sbr.rel (0) target = $region5
    $region4: #{mean_read_out.1} parent=1 // pred_region
      _
    $region5: #{mean_read_out.1} parent=1 // pred_fallthru
      _
    // Predicated region
    $region6: #{mean_read_out.1} parent=1 // pred_check
      _
    $region7: #{mean_read_out.1} parent=1 // pred_check_branch
      %12 = sbr.rel (0) target = $region9
    $region8: #{mean_read_out.1} parent=1 // pred_region
      %s14 = ssub.s32 2048, 128
      %15 = vsyncadd [#allocation5], %s14
      %s16 = sshll.u32 [#allocation4], 4
      %s17 = int_to_ptr.vmem [resolvable:$true] %s16
      %22 = dma.hbm_to_vmem [thread:$0]  %s1, 128, %s17, [#allocation5], 128, 128, 8
    $region9: #{mean_read_out.1} parent=1 // pred_fallthru
      _
    // Predicated region
    $region10: #{mean_read_out.1} parent=1 // pred_check
      _
    $region11: #{mean_read_out.1} parent=1 // pred_check_branch
      %24 = sbr.rel (0) target = $region13
    $region12: #{mean_read_out.1} parent=1 // pred_region
      %25 = dma.done [#allocation5], 2048
    $region13: #{mean_read_out.1} parent=1 // pred_fallthru
      _
    %p26 = scmp.eq.s32.totalorder 0, 0
    // Predicated region
    $region14: #{mean_read_out.1} parent=1 // pred_check
      %p27 = pneg %p26
    $region15: #{mean_read_out.1} parent=1 // pred_check_branch
      %29 = sbr.rel (%p27) target = $region17
    $region16: #{mean_read_out.1} parent=1 // pred_region
      %vm30 = vcmask 254976
      %31 = vst.msk [vmem:[#allocation2] sm:$0x3] %vm30, 0.0
      %vm32 = vcmask 1024
      %33 = vst.msk [vmem:[#allocation3] sm:$0x3] %vm32, 0.0
    $region17: #{mean_read_out.1} parent=1 // pred_fallthru
      _
    %v34 = vld [vmem:[#allocation4] sm:$0xff]
    %v35 = vld [vmem:[#allocation4 + $0x8] sm:$0xff]
    %v36 = vld [vmem:[#allocation4 + $0x10] sm:$0xff]
    %v37 = vld [vmem:[#allocation4 + $0x18] sm:$0xff]
    %v38 = vld [vmem:[#allocation4 + $0x20] sm:$0xff]
    %v39 = vld [vmem:[#allocation4 + $0x28] sm:$0xff]
    %v40 = vld [vmem:[#allocation4 + $0x30] sm:$0xff]
    %v41 = vld [vmem:[#allocation4 + $0x38] sm:$0xff]
    %v42 = vld [vmem:[#allocation4 + $0x40] sm:$0xff]
    %v43 = vld [vmem:[#allocation4 + $0x48] sm:$0xff]
    %v44 = vld [vmem:[#allocation4 + $0x50] sm:$0xff]
    %v45 = vld [vmem:[#allocation4 + $0x58] sm:$0xff]
    %v46 = vld [vmem:[#allocation4 + $0x60] sm:$0xff]
    %v47 = vld [vmem:[#allocation4 + $0x68] sm:$0xff]
    %v48 = vld [vmem:[#allocation4 + $0x70] sm:$0xff]
    %v49 = vld [vmem:[#allocation4 + $0x78] sm:$0xff]
    %v50 = vld [vmem:[%s0] sm:$0x1]
    %s51 = smul.u32 0, 128
    %v52 = vlaneseq
    %v53 = vshrl.u32 %v52, 7
    %v54 = vadd.s32 %v53, 8
    %v55 = vadd.s32 %v53, 16
    %v56 = vadd.s32 %v53, 24
    %v57 = vadd.s32 %v53, 32
    %v58 = vadd.s32 %v53, 40
    %v59 = vadd.s32 %v53, 48
    %v60 = vadd.s32 %v53, 56
    %v61 = vadd.s32 %v53, 64
    %v62 = vadd.s32 %v53, 72
    %v63 = vadd.s32 %v53, 80
    %v64 = vadd.s32 %v53, 88
    %v65 = vadd.s32 %v53, 96
    %v66 = vadd.s32 %v53, 104
    %v67 = vadd.s32 %v53, 112
    %v68 = vadd.s32 %v53, 120
    %v69 = vstv %s51
    %v70 = vadd.s32 %v69, %v53
    %v71 = vadd.s32 %v69, %v54
    %v72 = vadd.s32 %v69, %v55
    %v73 = vadd.s32 %v69, %v56
    %v74 = vadd.s32 %v69, %v57
    %v75 = vadd.s32 %v69, %v58
    %v76 = vadd.s32 %v69, %v59
    %v77 = vadd.s32 %v69, %v60
    %v78 = vadd.s32 %v69, %v61
    %v79 = vadd.s32 %v69, %v62
    %v80 = vadd.s32 %v69, %v63
    %v81 = vadd.s32 %v69, %v64
    %v82 = vadd.s32 %v69, %v65
    %v83 = vadd.s32 %v69, %v66
    %v84 = vadd.s32 %v69, %v67
    %v85 = vadd.s32 %v69, %v68
    %vm86 = vcmp.lt.s32.totalorder %v70, 8
    %vm87 = vcmp.lt.s32.totalorder %v71, 8
    %vm88 = vcmp.lt.s32.totalorder %v72, 8
    %vm89 = vcmp.lt.s32.totalorder %v73, 8
    %vm90 = vcmp.lt.s32.totalorder %v74, 8
    %vm91 = vcmp.lt.s32.totalorder %v75, 8
    %vm92 = vcmp.lt.s32.totalorder %v76, 8
    %vm93 = vcmp.lt.s32.totalorder %v77, 8
    %vm94 = vcmp.lt.s32.totalorder %v78, 8
    %vm95 = vcmp.lt.s32.totalorder %v79, 8
    %vm96 = vcmp.lt.s32.totalorder %v80, 8
    %vm97 = vcmp.lt.s32.totalorder %v81, 8
    %vm98 = vcmp.lt.s32.totalorder %v82, 8
    %vm99 = vcmp.lt.s32.totalorder %v83, 8
    %vm100 = vcmp.lt.s32.totalorder %v84, 8
    %vm101 = vcmp.lt.s32.totalorder %v85, 8
    %v102 = vsel %vm86, %v34, 0.0
    %v103 = vsel %vm87, %v35, 0.0
    %v104 = vsel %vm88, %v36, 0.0
    %v105 = vsel %vm89, %v37, 0.0
    %v106 = vsel %vm90, %v38, 0.0
    %v107 = vsel %vm91, %v39, 0.0
    %v108 = vsel %vm92, %v40, 0.0
    %v109 = vsel %vm93, %v41, 0.0
    %v110 = vsel %vm94, %v42, 0.0
    %v111 = vsel %vm95, %v43, 0.0
    %v112 = vsel %vm96, %v44, 0.0
    %v113 = vsel %vm97, %v45, 0.0
    %v114 = vsel %vm98, %v46, 0.0
    %v115 = vsel %vm99, %v47, 0.0
    %v116 = vsel %vm100, %v48, 0.0
    %v117 = vsel %vm101, %v49, 0.0
    %v118 = vlaneseq
    %v119 = vshrl.u32 %v118, 7
    %v120 = vsub.s32 0, %v119
    %v121 = vrot.slane %v50, %v120
    %vm122 = vcmp.eq.s32.totalorder %v53, %v121
    %v123 = vsel %vm122, 1, 0
    %v124 = vcvt.s32.f32 %v123
    %v125 = vld [vmem:[#allocation3] sm:$0x3]
    %vm126 = vcmask 1041408
    %v127 = vsel %vm126, %v124, 0.0
    %128 = vadd.xlane.f32.xlu0 %v127
    %v129 = vpop.xlane.xlu0 %128
    %v130 = vadd.f32 %v125, %v129
    %vm131 = vcmask 1024
    %132 = vst.msk [vmem:[#allocation3] sm:$0x3] %vm131, %v130
    %v133 = vld [vmem:[#allocation2] sm:$0x3]
    %134 = vmatprep.subr.mxu0 0.0
    %135 = vmatpush1.msra.mxu0 %v102
    %136 = vmatprep.subr.mxu0 0.0
    %137 = vmatpush1.msra.mxu0 %v103
    %138 = vmatprep.subr.mxu0 0.0
    %139 = vmatpush1.msra.mxu0 %v104
    %140 = vmatprep.subr.mxu0 0.0
    %141 = vmatpush1.msra.mxu0 %v105
    %142 = vmatprep.subr.mxu0 0.0
    %143 = vmatpush1.msra.mxu0 %v106
    %144 = vmatprep.subr.mxu0 0.0
    %145 = vmatpush1.msra.mxu0 %v107
    %146 = vmatprep.subr.mxu0 0.0
    %147 = vmatpush1.msra.mxu0 %v108
    %148 = vmatprep.subr.mxu0 0.0
    %149 = vmatpush1.msra.mxu0 %v109
    %150 = vmatprep.subr.mxu0 0.0
    %151 = vmatpush1.msra.mxu0 %v110
    %152 = vmatprep.subr.mxu0 0.0
    %153 = vmatpush1.msra.mxu0 %v111
    %154 = vmatprep.subr.mxu0 0.0
    %155 = vmatpush1.msra.mxu0 %v112
    %156 = vmatprep.subr.mxu0 0.0
    %157 = vmatpush1.msra.mxu0 %v113
    %158 = vmatprep.subr.mxu0 0.0
    %159 = vmatpush1.msra.mxu0 %v114
    %160 = vmatprep.subr.mxu0 0.0
    %161 = vmatpush1.msra.mxu0 %v115
    %162 = vmatprep.subr.mxu0 0.0
    %163 = vmatpush1.msra.mxu0 %v116
    %164 = vmatprep.subr.mxu0 0.0
    %165 = vmatpush1.msra.mxu0 %v117
    %166 = vmatprep.subr.mxu0 0.0
    %167 = vmatpush1.msra.mxu0 0.0
    %168 = vmatprep.subr.mxu0 0.0
    %169 = vmatpush1.msra.mxu0 0.0
    %170 = vmatprep.subr.mxu0 0.0
    %171 = vmatpush1.msra.mxu0 0.0
    %172 = vmatprep.subr.mxu0 0.0
    %173 = vmatpush1.msra.mxu0 0.0
    %174 = vmatprep.subr.mxu0 0.0
    %175 = vmatpush1.msra.mxu0 0.0
    %176 = vmatprep.subr.mxu0 0.0
    %177 = vmatpush1.msra.mxu0 0.0
    %178 = vmatprep.subr.mxu0 0.0
    %179 = vmatpush1.msra.mxu0 0.0
    %180 = vmatprep.subr.mxu0 0.0
    %181 = vmatpush1.msra.mxu0 0.0
    %182 = vmatprep.subr.mxu0 0.0
    %183 = vmatpush1.msra.mxu0 0.0
    %184 = vmatprep.subr.mxu0 0.0
    %185 = vmatpush1.msra.mxu0 0.0
    %186 = vmatprep.subr.mxu0 0.0
    %187 = vmatpush1.msra.mxu0 0.0
    %188 = vmatprep.subr.mxu0 0.0
    %189 = vmatpush1.msra.mxu0 0.0
    %190 = vmatprep.subr.mxu0 0.0
    %191 = vmatpush1.msra.mxu0 0.0
    %192 = vmatprep.subr.mxu0 0.0
    %193 = vmatpush1.msra.mxu0 0.0
    %194 = vmatprep.subr.mxu0 0.0
    %195 = vmatpush1.msra.mxu0 0.0
    %196 = vmatprep.subr.mxu0 0.0
    %197 = vmatpush1.msra.mxu0 0.0
    %198 = vmatprep.mubr.f32.mxu0 0.0
    %199 = vmatmul.mubr.f32.gmra.mrb[0].mxu0 %v124
    %v200 = vpop.f32.mrb[0].mxu0
    %v201 = vadd.f32 0.0, %v200
    %v202 = vpop.f32.mrb[0].mxu0
    %203 = vdwg.mxu0
    %v204 = vadd.f32 %v133, %v201
    %vm205 = vcmask 254976
    %206 = vst.msk [vmem:[#allocation2] sm:$0x3] %vm205, %v204
    // Predicated region
    $region18: #{mean_read_out.1} parent=1 // pred_check
      %p207 = pneg %p26
    $region19: #{mean_read_out.1} parent=1 // pred_check_branch
      %209 = sbr.rel (%p207) target = $region21
    $region20: #{mean_read_out.1} parent=1 // pred_region
      %v210 = vld [vmem:[#allocation3] sm:$0x3]
      %v211 = vmax.f32 %v210, 1.0
      %v212 = vrcp.pop %v211
      %v213 = vmul.f32 %v211, %v212
      %v214 = vsub.f32 2.0, %v213
      %v215 = vmul.f32 %v212, %v214
      %v216 = vld [vmem:[#allocation2] sm:$0x3]
      %218 = vset.pattern.permute.xlu0 0
      %219 = vperm.xlu0 %218, %v215
      %v220 = vpop.permute.xlu0 %219
      %v222 = vmul.f32 %v216, %v220
      %223 = vst.msk [vmem:[#allocation7] sm:$0x3] %vm205, %v222
    $region21: #{mean_read_out.1} parent=1 // pred_fallthru
      _
    // Predicated region
    $region22: #{mean_read_out.1} parent=1 // pred_check
      _
    $region23: #{mean_read_out.1} parent=1 // pred_check_branch
      %225 = sbr.rel (0) target = $region25
    $region24: #{mean_read_out.1} parent=1 // pred_region
      %s227 = ssub.s32 32, 32
      %228 = vsyncadd [#allocation6], %s227
      %s230 = sshll.u32 [#allocation7], 4
      %s231 = int_to_ptr.vmem [resolvable:$true] %s230
      %233 = dma.vmem_to_hbm [thread:$0]  %s231, 32, %s2, [#allocation6]
    $region25: #{mean_read_out.1} parent=1 // pred_fallthru
      _
    // Predicated region
    $region26: #{mean_read_out.1} parent=1 // pred_check
      _
    $region27: #{mean_read_out.1} parent=1 // pred_check_branch
      %235 = sbr.rel (0) target = $region29
    $region28: #{mean_read_out.1} parent=1 // pred_region
      %236 = dma.done [#allocation6], 32
    $region29: #{mean_read_out.1} parent=1 // pred_fallthru
      _
    %237 = vsyncpa [#allocation5], 1
    %238 = vsyncpa [#allocation6], 1

</llo_original>
